<compile_context>
chip_gen: v5e
topology: v5e:2x2
jax: 0.10.0
libtpu: 0.0.40
codegen_flags: <defaults>
</compile_context>

<pallas_src>
import math
import functools

import numpy as np
import jax
import jax.numpy as jnp
from jax.experimental import pallas as pl
from jax.experimental.pallas import tpu as pltpu


# ----------------------------------------------------------------------------
# Bilinear interpolation matrices (PyTorch align_corners=False semantics)
# ----------------------------------------------------------------------------
def _bilinear_matrix(in_size, out_size, scale):
    dst = np.arange(out_size, dtype=np.float64)
    src = np.maximum((dst + 0.5) / float(scale) - 0.5, 0.0)
    i0 = np.minimum(np.floor(src).astype(np.int64), in_size - 1)
    i1 = np.minimum(i0 + 1, in_size - 1)
    lam = (src - i0).astype(np.float32)
    m = np.zeros((out_size, in_size), dtype=np.float32)
    m[np.arange(out_size), i0] += 1.0 - lam
    m[np.arange(out_size), i1] += lam
    return m


def _upsample_matrix(ho, wo, hu, wu, scale, n):
    """Batch-block-diagonal fused bilinear-upsample matrix:
    up[n*Ho*Wo + q, n*Hu*Wu + r] = Wh[hu,ho] * Ww[wu,wo]; zero across batch.

    # TODO(synk): this Kronecker matrix grows as N^2*(Ho*Wo)*(Hu*Wu); past a
    # VMEM threshold (v7x's 64 MiB first) fall back to two separable matmuls
    # (apply Wh, then Ww).  Tiny (256 KiB) at the shapes exercised here."""
    wh = _bilinear_matrix(ho, hu, scale)                 # (Hu, Ho)
    ww = _bilinear_matrix(wo, wu, scale)                 # (Wu, Wo)
    up = np.kron(wh, ww).T.astype(np.float32)            # (Ho*Wo, Hu*Wu)
    return jnp.asarray(np.kron(np.eye(n, dtype=np.float32), up))


# ----------------------------------------------------------------------------
# Host-side (XLA) prep: fold weight_x into the conv weights and im2col the
# input into a lane-dense patch matrix (columns are n-major flattened output
# positions, so the batch is folded into the GEMM lanes).
# ----------------------------------------------------------------------------
def _prep_conv(x, w, b, wx):
    n, cin, h, wd = x.shape
    cout, _, kh, kw = w.shape
    ho, wo = h - kh + 1, wd - kw + 1
    xf = x.astype(jnp.float32)
    rows = []
    for ci in range(cin):               # (ci, ki, kj) order == OIHW flatten order
        for ki in range(kh):
            for kj in range(kw):
                rows.append(xf[:, ci, ki:ki + ho, kj:kj + wo].reshape(n, ho * wo))
    patches = jnp.stack(rows, axis=0).reshape(cin * kh * kw, n * ho * wo)
    w2 = (w.astype(jnp.float32) * jnp.float32(wx)).reshape(cout, cin * kh * kw)
    b2 = b.astype(jnp.float32).reshape(cout, 1)
    return patches, w2, b2, ho, wo


# ----------------------------------------------------------------------------
# Fused kernel: conv(g)+ReLU+upsample, conv(g_post)+ReLU+upsample, BatchNorm,
# nmODE combine.  Works on channel-major 2-D views (C, N*M); one channel tile
# per grid step.  weight_y / delta baked in as compile-time constants.
# ----------------------------------------------------------------------------
def _cr_b_kernel(*refs, has_left, weight_y, delta, inv_count):
    if has_left:
        (pp_ref, wp_ref, bp_ref, upp_ref,
         y_ref, left_ref, gamma_ref, beta_ref, ynext_ref, nleft_ref) = refs
    else:
        (pg_ref, wg_ref, bg_ref, upg_ref,
         pp_ref, wp_ref, bp_ref, upp_ref,
         y_ref, gamma_ref, beta_ref, ynext_ref, nleft_ref) = refs

    def conv_relu_up(p_ref, w_ref, b_ref, up_ref):
        # (Ct, CKK) x (CKK, N*Ho*Wo): every output channel of this tile, every
        # batch element, in one MXU GEMM.
        conv = jnp.dot(w_ref[...], p_ref[...], preferred_element_type=jnp.float32)
        conv = jnp.maximum(conv + b_ref[...], 0.0)       # bias + ReLU
        # (Ct, N*Ho*Wo) x (N*Ho*Wo, N*Hu*Wu): fused, batch-block-diagonal
        # bilinear upsample; lane-dense result slab.
        return jnp.dot(conv, up_ref[...], preferred_element_type=jnp.float32)

    if has_left:
        left = left_ref[...]
    else:
        left = conv_relu_up(pg_ref, wg_ref, bg_ref, upg_ref)
    nleft = conv_relu_up(pp_ref, wp_ref, bp_ref, upp_ref)
    nleft_ref[...] = nleft

    gamma = gamma_ref[...]          # (Ct, 1)
    beta = beta_ref[...]            # (Ct, 1)
    eps = 1e-5

    def bn(z):                      # two-pass per-channel batch statistics
        mu = jnp.sum(z, axis=1, keepdims=True) * inv_count
        d = z - mu
        var = jnp.sum(d * d, axis=1, keepdims=True) * inv_count
        return gamma * (d * jax.lax.rsqrt(var + eps)) + beta

    wyy = weight_y * y_ref[...]     # (Ct, N*M)
    y_diff = bn(wyy + left) - wyy
    ynext_ref[...] = ((1.0 - 0.5 * delta) * wyy
                      + (0.5 * delta) * ((1.0 - delta) * y_diff
                                         + bn(wyy + delta * y_diff + nleft)))


# ----------------------------------------------------------------------------
# CR_B forward (Pallas)
# ----------------------------------------------------------------------------
def cr_b_forward(params, x, x_post, y, delta, weight_x, weight_x_post, weight_y,
                 scale, scale_post, left):
    n, c, hy, wyd = y.shape
    m = hy * wyd

    # Channel-major flat views: rows = channels, lanes = (batch, spatial).
    y2 = jnp.transpose(y.astype(jnp.float32), (1, 0, 2, 3)).reshape(c, n * m)
    gamma = params["bn_gamma"].astype(jnp.float32).reshape(c, 1)
    beta = params["bn_beta"].astype(jnp.float32).reshape(c, 1)

    # g_post conv is always needed.
    pp, wp, bp, hop, wop = _prep_conv(x_post, params["gp_w"], params["gp_b"],
                                      weight_x_post)
    hup, wup = int(math.floor(hop * scale_post)), int(math.floor(wop * scale_post))
    assert hup * wup == m
    upp = _upsample_matrix(hop, wop, hup, wup, scale_post, n)

    has_left = left is not None
    if has_left:
        left2 = jnp.transpose(left.astype(jnp.float32), (1, 0, 2, 3)).reshape(c, n * m)
        inputs = [pp, wp, bp, upp, y2, left2, gamma, beta]
        chan_tiled = {1, 2, 4, 5, 6, 7}
    else:
        pg, wg, bg, hog, wog = _prep_conv(x, params["g_w"], params["g_b"], weight_x)
        hug, wug = int(math.floor(hog * scale)), int(math.floor(wog * scale))
        assert hug * wug == m
        upg = _upsample_matrix(hog, wog, hug, wug, scale, n)
        inputs = [pg, wg, bg, upg, pp, wp, bp, upp, y2, gamma, beta]
        chan_tiled = {1, 2, 5, 6, 8, 9, 10}

    # Channel tile: keep blocks a multiple of 8 sublanes (f32 tiling); give
    # v7x's two TensorCores separate tiles whenever C allows (>= 16).
    if c % 16 == 0:
        ct = c // 2
    elif c % 8 == 0:
        ct = 8
    else:
        ct = c
    grid = (c // ct,)

    def full_spec(a):
        return pl.BlockSpec(a.shape, lambda i: (0,) * a.ndim)

    def chan_spec(a):
        return pl.BlockSpec((ct,) + a.shape[1:],
                            lambda i: (i,) + (0,) * (a.ndim - 1))

    in_specs = [chan_spec(a) if idx in chan_tiled else full_spec(a)
                for idx, a in enumerate(inputs)]
    out_spec = pl.BlockSpec((ct, n * m), lambda i: (i, 0))

    # VMEM guard: derive the limit from actual resident bytes plus headroom.
    resident = sum(int(a.size) * a.dtype.itemsize for a in inputs) + 2 * c * n * m * 4
    vmem_limit = int(min(max(4 * resident, 16 << 20), 64 << 20))

    kernel = functools.partial(_cr_b_kernel, has_left=has_left,
                               weight_y=float(weight_y), delta=float(delta),
                               inv_count=1.0 / float(n * m))

    y_next2, nleft2 = pl.pallas_call(
        kernel,
        out_shape=(jax.ShapeDtypeStruct((c, n * m), jnp.float32),
                   jax.ShapeDtypeStruct((c, n * m), jnp.float32)),
        grid=grid,
        in_specs=in_specs,
        out_specs=(out_spec, out_spec),
        compiler_params=pltpu.CompilerParams(
            dimension_semantics=("parallel",),
            vmem_limit_bytes=vmem_limit),
    )(*inputs)

    # Layout plumbing back to NCHW (tiny, host-side XLA transpose).
    y_next = y_next2.reshape(c, n, hy, wyd).transpose(1, 0, 2, 3)
    next_left = nleft2.reshape(c, n, hup, wup).transpose(1, 0, 2, 3)
    return y_next, next_left


# ----------------------------------------------------------------------------
# Pure-JAX reference (sanity check)
# ----------------------------------------------------------------------------
def reference_forward(params, x, x_post, y, delta, weight_x, weight_x_post,
                      weight_y, scale, scale_post, left):
    hi = jax.lax.Precision.HIGHEST

    def conv_relu(inp, w, b):
        out = jax.lax.conv_general_dilated(
            inp, w, window_strides=(1, 1), padding="VALID",
            dimension_numbers=("NCHW", "OIHW", "NCHW"), precision=hi)
        return jnp.maximum(out + b[None, :, None, None], 0.0)

    def interp(inp, s):
        _, _, h, wd = inp.shape
        hu, wu = int(math.floor(h * s)), int(math.floor(wd * s))
        mh = jnp.asarray(_bilinear_matrix(h, hu, s))
        mw = jnp.asarray(_bilinear_matrix(wd, wu, s))
        return jnp.einsum("hH,ncHW,wW->nchw", mh, inp, mw, precision=hi)

    def bn(z):
        mu = jnp.mean(z, axis=(0, 2, 3), keepdims=True)
        var = jnp.mean((z - mu) ** 2, axis=(0, 2, 3), keepdims=True)
        g = params["bn_gamma"][None, :, None, None]
        bb = params["bn_beta"][None, :, None, None]
        return g * (z - mu) / jnp.sqrt(var + 1e-5) + bb

    if left is None:
        left = interp(conv_relu(weight_x * x, params["g_w"], params["g_b"]), scale)
    next_left = interp(conv_relu(weight_x_post * x_post,
                                 params["gp_w"], params["gp_b"]), scale_post)
    wyy = weight_y * y
    y_diff = -wyy + bn(wyy + left)
    y_next = (1 - delta / 2) * wyy + delta / 2 * ((1 - delta) * y_diff
                                                  + bn(wyy + delta * y_diff + next_left))
    return y_next, next_left


# ----------------------------------------------------------------------------
if __name__ == "__main__":
    # x, x_post: (2, 4, 10, 10) -> conv3x3 VALID -> (2, 8, 8, 8) -> x2 bilinear
    # upsample -> (2, 8, 16, 16);  y: (2, 8, 16, 16).
    N, CIN, CIN_POST, COUT = 2, 4, 4, 8
    H = W = 10
    KH = KW = 3
    scale = scale_post = 2.0
    delta, weight_x, weight_x_post, weight_y = 0.5, 0.7, 1.3, 0.9

    key = jax.random.PRNGKey(0)
    k1, k2, k3, k4, k5, k6, k7 = jax.random.split(key, 7)

    bound = 1.0 / math.sqrt(CIN * KH * KW)
    bound_p = 1.0 / math.sqrt(CIN_POST * KH * KW)
    params = {
        "g_w": jax.random.uniform(k1, (COUT, CIN, KH, KW), jnp.float32, -bound, bound),
        "g_b": jax.random.uniform(k2, (COUT,), jnp.float32, -bound, bound),
        "gp_w": jax.random.uniform(k3, (COUT, CIN_POST, KH, KW), jnp.float32, -bound_p, bound_p),
        "gp_b": jax.random.uniform(k4, (COUT,), jnp.float32, -bound_p, bound_p),
        "bn_gamma": jnp.ones((COUT,), jnp.float32),
        "bn_beta": jnp.zeros((COUT,), jnp.float32),
    }

    HU = int(math.floor((H - KH + 1) * scale))
    WU = int(math.floor((W - KW + 1) * scale))
    x = jax.random.normal(k5, (N, CIN, H, W), jnp.float32)
    x_post = jax.random.normal(k6, (N, CIN_POST, H, W), jnp.float32)
    y = jax.random.normal(k7, (N, COUT, HU, WU), jnp.float32)

    # Tolerance absorbs MXU default-precision matmuls in the kernel vs the
    # HIGHEST-precision XLA reference.
    tol = dict(rtol=1e-2, atol=1e-2)

    # --- Step 1: left is None -> both convs + BN/nmODE fused in one call ---
    y_next, next_left = cr_b_forward(params, x, x_post, y, delta, weight_x,
                                     weight_x_post, weight_y, scale, scale_post,
                                     left=None)
    jax.block_until_ready((y_next, next_left))

    ref_y_next, ref_next_left = reference_forward(params, x, x_post, y, delta,
                                                  weight_x, weight_x_post,
                                                  weight_y, scale, scale_post,
                                                  left=None)
    jax.block_until_ready((ref_y_next, ref_next_left))

    assert y_next.shape == (N, COUT, HU, WU)
    assert next_left.shape == (N, COUT, HU, WU)
    assert np.allclose(np.asarray(next_left), np.asarray(ref_next_left), **tol)
    assert np.allclose(np.asarray(y_next), np.asarray(ref_y_next), **tol)

    # --- Step 2: left provided -> single-conv path, still one fused call ---
    y_next2, next_left2 = cr_b_forward(params, x, x_post, ref_y_next, delta,
                                       weight_x, weight_x_post, weight_y,
                                       scale, scale_post, left=ref_next_left)
    jax.block_until_ready((y_next2, next_left2))
    ref_y_next2, ref_next_left2 = reference_forward(params, x, x_post, ref_y_next,
                                                    delta, weight_x, weight_x_post,
                                                    weight_y, scale, scale_post,
                                                    left=ref_next_left)
    jax.block_until_ready((ref_y_next2, ref_next_left2))
    assert np.allclose(np.asarray(next_left2), np.asarray(ref_next_left2), **tol)
    assert np.allclose(np.asarray(y_next2), np.asarray(ref_y_next2), **tol)

    print("KERNEL_OK")
</pallas_src>

<mosaic_0001>
module attributes {stable_mosaic.version = 11 : i64} {
  func.func @_cr_b_kernel(%arg0: i32, %arg1: memref<36x128xf32, #tpu.memory_space<vmem>>, %arg2: memref<8x36xf32, #tpu.memory_space<vmem>>, %arg3: memref<8x1xf32, #tpu.memory_space<vmem>>, %arg4: memref<128x512xf32, #tpu.memory_space<vmem>>, %arg5: memref<36x128xf32, #tpu.memory_space<vmem>>, %arg6: memref<8x36xf32, #tpu.memory_space<vmem>>, %arg7: memref<8x1xf32, #tpu.memory_space<vmem>>, %arg8: memref<128x512xf32, #tpu.memory_space<vmem>>, %arg9: memref<8x512xf32, #tpu.memory_space<vmem>>, %arg10: memref<8x1xf32, #tpu.memory_space<vmem>>, %arg11: memref<8x1xf32, #tpu.memory_space<vmem>>, %arg12: memref<8x512xf32, #tpu.memory_space<vmem>>, %arg13: memref<8x512xf32, #tpu.memory_space<vmem>>) attributes {dimension_semantics = [#tpu.dimension_semantics<parallel>], iteration_bounds = array<i64: 1>, scalar_prefetch = 0 : i64, scratch_operands = 0 : i64, tpu.core_type = #tpu.core_type<tc>, window_params = [{pipeline_mode = #tpu.pipeline_mode<synchronous>, transform_indices = @transform_0, window_bounds = array<i64: 36, 128>}, {transform_indices = @transform_1, window_bounds = array<i64: 8, 36>}, {transform_indices = @transform_2, window_bounds = array<i64: 8, 1>}, {pipeline_mode = #tpu.pipeline_mode<synchronous>, transform_indices = @transform_3, window_bounds = array<i64: 128, 512>}, {pipeline_mode = #tpu.pipeline_mode<synchronous>, transform_indices = @transform_4, window_bounds = array<i64: 36, 128>}, {transform_indices = @transform_5, window_bounds = array<i64: 8, 36>}, {transform_indices = @transform_6, window_bounds = array<i64: 8, 1>}, {pipeline_mode = #tpu.pipeline_mode<synchronous>, transform_indices = @transform_7, window_bounds = array<i64: 128, 512>}, {transform_indices = @transform_8, window_bounds = array<i64: 8, 512>}, {transform_indices = @transform_9, window_bounds = array<i64: 8, 1>}, {transform_indices = @transform_10, window_bounds = array<i64: 8, 1>}, {transform_indices = @transform_11, window_bounds = array<i64: 8, 512>}, {transform_indices = @transform_12, window_bounds = array<i64: 8, 512>}]} {
    %c0 = arith.constant 0 : index
    %c0_0 = arith.constant 0 : index
    %0 = vector.load %arg2[%c0, %c0_0] : memref<8x36xf32, #tpu.memory_space<vmem>>, vector<8x36xf32>
    %c0_1 = arith.constant 0 : index
    %c0_2 = arith.constant 0 : index
    %1 = vector.load %arg1[%c0_1, %c0_2] : memref<36x128xf32, #tpu.memory_space<vmem>>, vector<36x128xf32>
    %cst = arith.constant dense<0.000000e+00> : vector<8x128xf32>
    %2 = tpu.matmul %0, %1, %cst {dimension_numbers = #tpu.dot_dimension_numbers<[1], [0], [0], [1], [0, 0, 1, 1], [], []>} : vector<8x36xf32>, vector<36x128xf32>, vector<8x128xf32> -> vector<8x128xf32>
    %c0_3 = arith.constant 0 : index
    %c0_4 = arith.constant 0 : index
    %3 = vector.load %arg3[%c0_3, %c0_4] : memref<8x1xf32, #tpu.memory_space<vmem>>, vector<8x1xf32>
    %4 = vector.broadcast %3 : vector<8x1xf32> to vector<8x128xf32>
    %5 = arith.addf %2, %4 : vector<8x128xf32>
    %cst_5 = arith.constant 0.000000e+00 : f32
    %6 = vector.broadcast %cst_5 : f32 to vector<8x128xf32>
    %7 = arith.maximumf %5, %6 : vector<8x128xf32>
    %c0_6 = arith.constant 0 : index
    %c0_7 = arith.constant 0 : index
    %8 = vector.load %arg4[%c0_6, %c0_7] : memref<128x512xf32, #tpu.memory_space<vmem>>, vector<128x512xf32>
    %cst_8 = arith.constant dense<0.000000e+00> : vector<8x512xf32>
    %9 = tpu.matmul %7, %8, %cst_8 {dimension_numbers = #tpu.dot_dimension_numbers<[1], [0], [0], [1], [0, 0, 1, 1], [], []>} : vector<8x128xf32>, vector<128x512xf32>, vector<8x512xf32> -> vector<8x512xf32>
    %c0_9 = arith.constant 0 : index
    %c0_10 = arith.constant 0 : index
    %10 = vector.load %arg6[%c0_9, %c0_10] : memref<8x36xf32, #tpu.memory_space<vmem>>, vector<8x36xf32>
    %c0_11 = arith.constant 0 : index
    %c0_12 = arith.constant 0 : index
    %11 = vector.load %arg5[%c0_11, %c0_12] : memref<36x128xf32, #tpu.memory_space<vmem>>, vector<36x128xf32>
    %cst_13 = arith.constant dense<0.000000e+00> : vector<8x128xf32>
    %12 = tpu.matmul %10, %11, %cst_13 {dimension_numbers = #tpu.dot_dimension_numbers<[1], [0], [0], [1], [0, 0, 1, 1], [], []>} : vector<8x36xf32>, vector<36x128xf32>, vector<8x128xf32> -> vector<8x128xf32>
    %c0_14 = arith.constant 0 : index
    %c0_15 = arith.constant 0 : index
    %13 = vector.load %arg7[%c0_14, %c0_15] : memref<8x1xf32, #tpu.memory_space<vmem>>, vector<8x1xf32>
    %14 = vector.broadcast %13 : vector<8x1xf32> to vector<8x128xf32>
    %15 = arith.addf %12, %14 : vector<8x128xf32>
    %cst_16 = arith.constant 0.000000e+00 : f32
    %16 = vector.broadcast %cst_16 : f32 to vector<8x128xf32>
    %17 = arith.maximumf %15, %16 : vector<8x128xf32>
    %c0_17 = arith.constant 0 : index
    %c0_18 = arith.constant 0 : index
    %18 = vector.load %arg8[%c0_17, %c0_18] : memref<128x512xf32, #tpu.memory_space<vmem>>, vector<128x512xf32>
    %cst_19 = arith.constant dense<0.000000e+00> : vector<8x512xf32>
    %19 = tpu.matmul %17, %18, %cst_19 {dimension_numbers = #tpu.dot_dimension_numbers<[1], [0], [0], [1], [0, 0, 1, 1], [], []>} : vector<8x128xf32>, vector<128x512xf32>, vector<8x512xf32> -> vector<8x512xf32>
    %c0_20 = arith.constant 0 : index
    %c0_21 = arith.constant 0 : index
    %20 = vector.load %arg13[%c0_20, %c0_21] : memref<8x512xf32, #tpu.memory_space<vmem>>, vector<8x512xf32>
    tpu.vector_store %arg13[%c0_20, %c0_21], %19 {strides = array<i32>} : memref<8x512xf32, #tpu.memory_space<vmem>>, vector<8x512xf32>,
    %c0_22 = arith.constant 0 : index
    %c0_23 = arith.constant 0 : index
    %21 = vector.load %arg10[%c0_22, %c0_23] : memref<8x1xf32, #tpu.memory_space<vmem>>, vector<8x1xf32>
    %c0_24 = arith.constant 0 : index
    %c0_25 = arith.constant 0 : index
    %22 = vector.load %arg11[%c0_24, %c0_25] : memref<8x1xf32, #tpu.memory_space<vmem>>, vector<8x1xf32>
    %c0_26 = arith.constant 0 : index
    %c0_27 = arith.constant 0 : index
    %23 = vector.load %arg9[%c0_26, %c0_27] : memref<8x512xf32, #tpu.memory_space<vmem>>, vector<8x512xf32>
    %cst_28 = arith.constant 0.899999976 : f32
    %24 = vector.broadcast %cst_28 : f32 to vector<8x512xf32>
    %25 = arith.mulf %24, %23 : vector<8x512xf32>
    %26 = arith.addf %25, %9 : vector<8x512xf32>
    %cst_29 = arith.constant dense<0.000000e+00> : vector<8xf32>
    %27 = vector.multi_reduction <add>, %26, %cst_29 [1] : vector<8x512xf32> to vector<8xf32>
    %28 = vector.shape_cast %27 : vector<8xf32> to vector<8x1xf32>
    %cst_30 = arith.constant 0.001953125 : f32
    %29 = vector.broadcast %cst_30 : f32 to vector<8x1xf32>
    %30 = arith.mulf %28, %29 : vector<8x1xf32>
    %31 = vector.broadcast %30 : vector<8x1xf32> to vector<8x512xf32>
    %32 = arith.subf %26, %31 : vector<8x512xf32>
    %33 = arith.mulf %32, %32 : vector<8x512xf32>
    %cst_31 = arith.constant dense<0.000000e+00> : vector<8xf32>
    %34 = vector.multi_reduction <add>, %33, %cst_31 [1] : vector<8x512xf32> to vector<8xf32>
    %35 = vector.shape_cast %34 : vector<8xf32> to vector<8x1xf32>
    %cst_32 = arith.constant 0.001953125 : f32
    %36 = vector.broadcast %cst_32 : f32 to vector<8x1xf32>
    %37 = arith.mulf %35, %36 : vector<8x1xf32>
    %cst_33 = arith.constant 9.99999974E-6 : f32
    %38 = vector.broadcast %cst_33 : f32 to vector<8x1xf32>
    %39 = arith.addf %37, %38 : vector<8x1xf32>
    %40 = math.rsqrt %39 : vector<8x1xf32>
    %41 = vector.broadcast %40 : vector<8x1xf32> to vector<8x512xf32>
    %42 = arith.mulf %32, %41 : vector<8x512xf32>
    %43 = vector.broadcast %21 : vector<8x1xf32> to vector<8x512xf32>
    %44 = arith.mulf %43, %42 : vector<8x512xf32>
    %45 = vector.broadcast %22 : vector<8x1xf32> to vector<8x512xf32>
    %46 = arith.addf %44, %45 : vector<8x512xf32>
    %47 = arith.subf %46, %25 : vector<8x512xf32>
    %cst_34 = arith.constant 7.500000e-01 : f32
    %48 = vector.broadcast %cst_34 : f32 to vector<8x512xf32>
    %49 = arith.mulf %48, %25 : vector<8x512xf32>
    %cst_35 = arith.constant 5.000000e-01 : f32
    %50 = vector.broadcast %cst_35 : f32 to vector<8x512xf32>
    %51 = arith.mulf %50, %47 : vector<8x512xf32>
    %cst_36 = arith.constant 5.000000e-01 : f32
    %52 = vector.broadcast %cst_36 : f32 to vector<8x512xf32>
    %53 = arith.mulf %52, %47 : vector<8x512xf32>
    %54 = arith.addf %25, %53 : vector<8x512xf32>
    %55 = arith.addf %54, %19 : vector<8x512xf32>
    %cst_37 = arith.constant dense<0.000000e+00> : vector<8xf32>
    %56 = vector.multi_reduction <add>, %55, %cst_37 [1] : vector<8x512xf32> to vector<8xf32>
    %57 = vector.shape_cast %56 : vector<8xf32> to vector<8x1xf32>
    %cst_38 = arith.constant 0.001953125 : f32
    %58 = vector.broadcast %cst_38 : f32 to vector<8x1xf32>
    %59 = arith.mulf %57, %58 : vector<8x1xf32>
    %60 = vector.broadcast %59 : vector<8x1xf32> to vector<8x512xf32>
    %61 = arith.subf %55, %60 : vector<8x512xf32>
    %62 = arith.mulf %61, %61 : vector<8x512xf32>
    %cst_39 = arith.constant dense<0.000000e+00> : vector<8xf32>
    %63 = vector.multi_reduction <add>, %62, %cst_39 [1] : vector<8x512xf32> to vector<8xf32>
    %64 = vector.shape_cast %63 : vector<8xf32> to vector<8x1xf32>
    %cst_40 = arith.constant 0.001953125 : f32
    %65 = vector.broadcast %cst_40 : f32 to vector<8x1xf32>
    %66 = arith.mulf %64, %65 : vector<8x1xf32>
    %cst_41 = arith.constant 9.99999974E-6 : f32
    %67 = vector.broadcast %cst_41 : f32 to vector<8x1xf32>
    %68 = arith.addf %66, %67 : vector<8x1xf32>
    %69 = math.rsqrt %68 : vector<8x1xf32>
    %70 = vector.broadcast %69 : vector<8x1xf32> to vector<8x512xf32>
    %71 = arith.mulf %61, %70 : vector<8x512xf32>
    %72 = vector.broadcast %21 : vector<8x1xf32> to vector<8x512xf32>
    %73 = arith.mulf %72, %71 : vector<8x512xf32>
    %74 = vector.broadcast %22 : vector<8x1xf32> to vector<8x512xf32>
    %75 = arith.addf %73, %74 : vector<8x512xf32>
    %76 = arith.addf %51, %75 : vector<8x512xf32>
    %cst_42 = arith.constant 2.500000e-01 : f32
    %77 = vector.broadcast %cst_42 : f32 to vector<8x512xf32>
    %78 = arith.mulf %77, %76 : vector<8x512xf32>
    %79 = arith.addf %49, %78 : vector<8x512xf32>
    %c0_43 = arith.constant 0 : index
    %c0_44 = arith.constant 0 : index
    %80 = vector.load %arg12[%c0_43, %c0_44] : memref<8x512xf32, #tpu.memory_space<vmem>>, vector<8x512xf32>
    tpu.vector_store %arg12[%c0_43, %c0_44], %79 {strides = array<i32>} : memref<8x512xf32, #tpu.memory_space<vmem>>, vector<8x512xf32>,
    return
  }
  func.func @transform_0(%arg0: i32) -> (i32, i32) {
    %c0_i32 = arith.constant 0 : i32
    %c0_i32_0 = arith.constant 0 : i32
    %c0_i32_1 = arith.constant 0 : i32
    return %c0_i32, %c0_i32_0 : i32, i32
  }
  func.func @transform_1(%arg0: i32) -> (i32, i32) {
    %c0_i32 = arith.constant 0 : i32
    %c0_i32_0 = arith.constant 0 : i32
    return %arg0, %c0_i32 : i32, i32
  }
  func.func @transform_2(%arg0: i32) -> (i32, i32) {
    %c0_i32 = arith.constant 0 : i32
    %c0_i32_0 = arith.constant 0 : i32
    return %arg0, %c0_i32 : i32, i32
  }
  func.func @transform_3(%arg0: i32) -> (i32, i32) {
    %c0_i32 = arith.constant 0 : i32
    %c0_i32_0 = arith.constant 0 : i32
    %c0_i32_1 = arith.constant 0 : i32
    return %c0_i32, %c0_i32_0 : i32, i32
  }
  func.func @transform_4(%arg0: i32) -> (i32, i32) {
    %c0_i32 = arith.constant 0 : i32
    %c0_i32_0 = arith.constant 0 : i32
    %c0_i32_1 = arith.constant 0 : i32
    return %c0_i32, %c0_i32_0 : i32, i32
  }
  func.func @transform_5(%arg0: i32) -> (i32, i32) {
    %c0_i32 = arith.constant 0 : i32
    %c0_i32_0 = arith.constant 0 : i32
    return %arg0, %c0_i32 : i32, i32
  }
  func.func @transform_6(%arg0: i32) -> (i32, i32) {
    %c0_i32 = arith.constant 0 : i32
    %c0_i32_0 = arith.constant 0 : i32
    return %arg0, %c0_i32 : i32, i32
  }
  func.func @transform_7(%arg0: i32) -> (i32, i32) {
    %c0_i32 = arith.constant 0 : i32
    %c0_i32_0 = arith.constant 0 : i32
    %c0_i32_1 = arith.constant 0 : i32
    return %c0_i32, %c0_i32_0 : i32, i32
  }
  func.func @transform_8(%arg0: i32) -> (i32, i32) {
    %c0_i32 = arith.constant 0 : i32
    %c0_i32_0 = arith.constant 0 : i32
    return %arg0, %c0_i32 : i32, i32
  }
  func.func @transform_9(%arg0: i32) -> (i32, i32) {
    %c0_i32 = arith.constant 0 : i32
    %c0_i32_0 = arith.constant 0 : i32
    return %arg0, %c0_i32 : i32, i32
  }
  func.func @transform_10(%arg0: i32) -> (i32, i32) {
    %c0_i32 = arith.constant 0 : i32
    %c0_i32_0 = arith.constant 0 : i32
    return %arg0, %c0_i32 : i32, i32
  }
  func.func @transform_11(%arg0: i32) -> (i32, i32) {
    %c0_i32 = arith.constant 0 : i32
    %c0_i32_0 = arith.constant 0 : i32
    return %arg0, %c0_i32 : i32, i32
  }
  func.func @transform_12(%arg0: i32) -> (i32, i32) {
    %c0_i32 = arith.constant 0 : i32
    %c0_i32_0 = arith.constant 0 : i32
    return %arg0, %c0_i32 : i32, i32
  }
}

</mosaic_0001>

<llo_original>
// kernel: tpu_custom_call.1
$region0: #{tpu_custom_call.1}
  #allocation0 [shape = 'u32[]', space=smem, size = 0x4, offset = 0x4, fixed_abs, tag = 'smem constant byte address 0x4 - core index']
  #allocation1 [shape = 'u32[72,128]{1,0:T(1,128)}', space=vmem, size = 0x9000, scoped, tag = 'internal scratch']
  %s0 = inlined_call_operand.hbm [shape: f32[36,128], index: 0, kind: input, shape index: {}]
  %s1 = inlined_call_operand.vmem [shape: f32[8,36], index: 1, kind: input, shape index: {}]
  %s2 = inlined_call_operand.vmem [shape: f32[8,1], index: 2, kind: input, shape index: {}]
  %s3 = inlined_call_operand.hbm [shape: f32[128,512], index: 3, kind: input, shape index: {}]
  %s4 = inlined_call_operand.hbm [shape: f32[36,128], index: 4, kind: input, shape index: {}]
  %s5 = inlined_call_operand.vmem [shape: f32[8,36], index: 5, kind: input, shape index: {}]
  %s6 = inlined_call_operand.vmem [shape: f32[8,1], index: 6, kind: input, shape index: {}]
  %s7 = inlined_call_operand.hbm [shape: f32[128,512], index: 7, kind: input, shape index: {}]
  %s8 = inlined_call_operand.hbm [shape: f32[8,512], index: 8, kind: input, shape index: {}]
  %s9 = inlined_call_operand.vmem [shape: f32[8,1], index: 9, kind: input, shape index: {}]
  %s10 = inlined_call_operand.vmem [shape: f32[8,1], index: 10, kind: input, shape index: {}]
  %s11 = inlined_call_operand.hbm [shape: f32[8,512], index: 11, kind: output, shape index: {0}]
  %s12 = inlined_call_operand.hbm [shape: f32[8,512], index: 12, kind: output, shape index: {1}]
  %13 = xla_tuple %s11, %s12
  %s14 = sld [smem:[#allocation0]]
  $region82: #{tpu_custom_call.1} parent=0
    _
  %s16 = ssub.s32 1, %s14
  %s17 = scalar_select 0, %s16, %s14
  $region1: #{tpu_custom_call.1} parent=0
    #allocation2 [shape = 'u8[20480]{0}', space=vmem, size = 0x5000, scoped, tag = 'input window, operand 0, single buffered']
    #allocation3 [shape = 's32[1]{0}', space=sflag, size = 0x4, scoped, tag = 'scoped memory for tpu_custom_call.1']
    #allocation4 [shape = 's32[1]{0}', space=sflag, size = 0x4, scoped, tag = 'scoped memory for tpu_custom_call.1']
    #allocation5 [shape = 'u8[262144]{0}', space=vmem, size = 0x40000, scoped, tag = 'input window, operand 3, single buffered']
    #allocation6 [shape = 's32[1]{0}', space=sflag, size = 0x4, scoped, tag = 'scoped memory for tpu_custom_call.1']
    #allocation7 [shape = 'u8[20480]{0}', space=vmem, size = 0x5000, scoped, tag = 'input window, operand 4, single buffered']
    #allocation8 [shape = 'u8[262144]{0}', space=vmem, size = 0x40000, scoped, tag = 'input window, operand 7, single buffered']
    #allocation9 [shape = 's32[1]{0}', space=sflag, size = 0x4, scoped, tag = 'scoped memory for tpu_custom_call.1']
    #allocation10 [shape = 'u8[16384]{0}', space=vmem, size = 0x4000, scoped, tag = 'input window, operand 8, single buffered']
    #allocation11 [shape = 'u8[16384]{0}', space=vmem, size = 0x4000, scoped, tag = 'output window, operand 0, single buffered']
    #allocation12 [shape = 'u8[16384]{0}', space=vmem, size = 0x4000, scoped, tag = 'output window, operand 1, single buffered']
    #allocation13 [shape = 's32[1]{0}', space=sflag, size = 0x4, scoped, tag = 'scoped memory for tpu_custom_call.1']
    %18 = vsyncpa [#allocation3], 0
    %19 = vsyncpa [#allocation6], 0
    %20 = vsyncpa [#allocation9], 0
    %21 = vsyncpa [#allocation4], 0
    %22 = vsyncpa [#allocation13], 0
    // Predicated region
    $region2: #{tpu_custom_call.1} parent=1 // pred_check
      _
    $region3: #{tpu_custom_call.1} parent=1 // pred_check_branch
      %24 = sbr.rel (0) target = $region5
    $region4: #{tpu_custom_call.1} parent=1 // pred_region
      %26 = vsyncadd [#allocation3], 0
      %s27 = sshll.u32 %s0, 4
      %s28 = int_to_ptr.hbm [resolvable:$true] %s27
      %s29 = sshll.u32 [#allocation2], 4
      %s30 = int_to_ptr.vmem [resolvable:$true] %s29
      %35 = dma.hbm_to_vmem [thread:$0]  %s28, 640, %s30, [#allocation3], 128, 128, 8
    $region5: #{tpu_custom_call.1} parent=1 // pred_fallthru
      _
    // Predicated region
    $region6: #{tpu_custom_call.1} parent=1 // pred_check
      _
    $region7: #{tpu_custom_call.1} parent=1 // pred_check_branch
      %37 = sbr.rel (0) target = $region9
    $region8: #{tpu_custom_call.1} parent=1 // pred_region
      _
    $region9: #{tpu_custom_call.1} parent=1 // pred_fallthru
      _
    // Predicated region
    $region10: #{tpu_custom_call.1} parent=1 // pred_check
      _
    $region11: #{tpu_custom_call.1} parent=1 // pred_check_branch
      %39 = sbr.rel (0) target = $region13
    $region12: #{tpu_custom_call.1} parent=1 // pred_region
      _
    $region13: #{tpu_custom_call.1} parent=1 // pred_fallthru
      _
    // Predicated region
    $region14: #{tpu_custom_call.1} parent=1 // pred_check
      _
    $region15: #{tpu_custom_call.1} parent=1 // pred_check_branch
      %41 = sbr.rel (0) target = $region17
    $region16: #{tpu_custom_call.1} parent=1 // pred_region
      %43 = vsyncadd [#allocation6], 0
      %s44 = sshll.u32 %s3, 4
      %s45 = int_to_ptr.hbm [resolvable:$true] %s44
      %s46 = sshll.u32 [#allocation5], 4
      %s47 = int_to_ptr.vmem [resolvable:$true] %s46
      %52 = dma.hbm_to_vmem [thread:$0]  %s45, 8192, %s47, [#allocation6], 512, 512, 32
    $region17: #{tpu_custom_call.1} parent=1 // pred_fallthru
      _
    // Predicated region
    $region18: #{tpu_custom_call.1} parent=1 // pred_check
      _
    $region19: #{tpu_custom_call.1} parent=1 // pred_check_branch
      %54 = sbr.rel (0) target = $region21
    $region20: #{tpu_custom_call.1} parent=1 // pred_region
      %56 = vsyncadd [#allocation6], 0
      %s57 = sshll.u32 %s4, 4
      %s58 = int_to_ptr.hbm [resolvable:$true] %s57
      %s59 = sshll.u32 [#allocation7], 4
      %s60 = int_to_ptr.vmem [resolvable:$true] %s59
      %65 = dma.hbm_to_vmem [thread:$0]  %s58, 640, %s60, [#allocation6], 128, 128, 8
    $region21: #{tpu_custom_call.1} parent=1 // pred_fallthru
      _
    // Predicated region
    $region22: #{tpu_custom_call.1} parent=1 // pred_check
      _
    $region23: #{tpu_custom_call.1} parent=1 // pred_check_branch
      %67 = sbr.rel (0) target = $region25
    $region24: #{tpu_custom_call.1} parent=1 // pred_region
      _
    $region25: #{tpu_custom_call.1} parent=1 // pred_fallthru
      _
    // Predicated region
    $region26: #{tpu_custom_call.1} parent=1 // pred_check
      _
    $region27: #{tpu_custom_call.1} parent=1 // pred_check_branch
      %69 = sbr.rel (0) target = $region29
    $region28: #{tpu_custom_call.1} parent=1 // pred_region
      _
    $region29: #{tpu_custom_call.1} parent=1 // pred_fallthru
      _
    // Predicated region
    $region30: #{tpu_custom_call.1} parent=1 // pred_check
      _
    $region31: #{tpu_custom_call.1} parent=1 // pred_check_branch
      %71 = sbr.rel (0) target = $region33
    $region32: #{tpu_custom_call.1} parent=1 // pred_region
      %73 = vsyncadd [#allocation9], 0
      %s74 = sshll.u32 %s7, 4
      %s75 = int_to_ptr.hbm [resolvable:$true] %s74
      %s76 = sshll.u32 [#allocation8], 4
      %s77 = int_to_ptr.vmem [resolvable:$true] %s76
      %82 = dma.hbm_to_vmem [thread:$0]  %s75, 8192, %s77, [#allocation9], 512, 512, 32
    $region33: #{tpu_custom_call.1} parent=1 // pred_fallthru
      _
    // Predicated region
    $region34: #{tpu_custom_call.1} parent=1 // pred_check
      _
    $region35: #{tpu_custom_call.1} parent=1 // pred_check_branch
      %84 = sbr.rel (0) target = $region37
    $region36: #{tpu_custom_call.1} parent=1 // pred_region
      %86 = vsyncadd [#allocation9], 0
      %s88 = sshll.u32 %s8, 4
      %s89 = int_to_ptr.hbm [resolvable:$true] %s88
      %s90 = sshll.u32 [#allocation10], 4
      %s91 = int_to_ptr.vmem [resolvable:$true] %s90
      %93 = dma.hbm_to_vmem [thread:$0]  %s89, 512, %s91, [#allocation9]
    $region37: #{tpu_custom_call.1} parent=1 // pred_fallthru
      _
    // Predicated region
    $region38: #{tpu_custom_call.1} parent=1 // pred_check
      _
    $region39: #{tpu_custom_call.1} parent=1 // pred_check_branch
      %95 = sbr.rel (0) target = $region41
    $region40: #{tpu_custom_call.1} parent=1 // pred_region
      _
    $region41: #{tpu_custom_call.1} parent=1 // pred_fallthru
      _
    // Predicated region
    $region42: #{tpu_custom_call.1} parent=1 // pred_check
      _
    $region43: #{tpu_custom_call.1} parent=1 // pred_check_branch
      %97 = sbr.rel (0) target = $region45
    $region44: #{tpu_custom_call.1} parent=1 // pred_region
      _
    $region45: #{tpu_custom_call.1} parent=1 // pred_fallthru
      _
    // Predicated region
    $region46: #{tpu_custom_call.1} parent=1 // pred_check
      _
    $region47: #{tpu_custom_call.1} parent=1 // pred_check_branch
      %99 = sbr.rel (0) target = $region49
    $region48: #{tpu_custom_call.1} parent=1 // pred_region
      %101 = dma.done [#allocation3], 640
    $region49: #{tpu_custom_call.1} parent=1 // pred_fallthru
      _
    // Predicated region
    $region50: #{tpu_custom_call.1} parent=1 // pred_check
      _
    $region51: #{tpu_custom_call.1} parent=1 // pred_check_branch
      %103 = sbr.rel (0) target = $region53
    $region52: #{tpu_custom_call.1} parent=1 // pred_region
      %105 = dma.done [#allocation6], 8192
    $region53: #{tpu_custom_call.1} parent=1 // pred_fallthru
      _
    // Predicated region
    $region54: #{tpu_custom_call.1} parent=1 // pred_check
      _
    $region55: #{tpu_custom_call.1} parent=1 // pred_check_branch
      %107 = sbr.rel (0) target = $region57
    $region56: #{tpu_custom_call.1} parent=1 // pred_region
      %109 = dma.done [#allocation6], 640
    $region57: #{tpu_custom_call.1} parent=1 // pred_fallthru
      _
    // Predicated region
    $region58: #{tpu_custom_call.1} parent=1 // pred_check
      _
    $region59: #{tpu_custom_call.1} parent=1 // pred_check_branch
      %111 = sbr.rel (0) target = $region61
    $region60: #{tpu_custom_call.1} parent=1 // pred_region
      %113 = dma.done [#allocation9], 8192
    $region61: #{tpu_custom_call.1} parent=1 // pred_fallthru
      _
    // Predicated region
    $region62: #{tpu_custom_call.1} parent=1 // pred_check
      _
    $region63: #{tpu_custom_call.1} parent=1 // pred_check_branch
      %115 = sbr.rel (0) target = $region65
    $region64: #{tpu_custom_call.1} parent=1 // pred_region
      %117 = dma.done [#allocation9], 512
    $region65: #{tpu_custom_call.1} parent=1 // pred_fallthru
      _
    %v118 = vld [vmem:[%s1] sm:$0xff]
    %v119 = vld [vmem:[#allocation2] sm:$0xff]
    %v120 = vld [vmem:[#allocation2 + $0x8] sm:$0xff]
    %v121 = vld [vmem:[#allocation2 + $0x10] sm:$0xff]
    %v122 = vld [vmem:[#allocation2 + $0x18] sm:$0xff]
    %v123 = vld [vmem:[#allocation2 + $0x20] sm:$0xf]
    %v124 = vld [vmem:[%s2] sm:$0xff]
    %126 = vset.pattern.permute.xlu0 0
    %127 = vperm.xlu0 %126, %v124
    %v128 = vpop.permute.xlu0 %127
    %vm130 = vcmask 293888
    %v132 = vsel %vm130, %v118, 0
    %vm134 = vcmask 1043456
    %v136 = vsel %vm134, %v123, 0
    %138 = vmatpush.msra.mxu0 0.0
    %139 = vmatpush.msra.mxu0 0.0
    %140 = vmatpush.msra.mxu0 0.0
    %141 = vmatpush.msra.mxu0 0.0
    %142 = vmatpush.msra.mxu0 0.0
    %143 = vmatpush.msra.mxu0 0.0
    %144 = vmatpush.msra.mxu0 0.0
    %145 = vmatpush.msra.mxu0 0.0
    %146 = vmatpush.msra.mxu0 0.0
    %147 = vmatpush.msra.mxu0 0.0
    %148 = vmatpush.msra.mxu0 0.0
    %149 = vmatpush.msra.mxu0 %v136
    %150 = vmatpush.msra.mxu0 %v122
    %151 = vmatpush.msra.mxu0 %v121
    %152 = vmatpush.msra.mxu0 %v120
    %153 = vmatpush.msra.mxu0 %v119
    %154 = vmatmul.f32.gmra.mxu0 %v132
    %v155 = vpop.f32.mrf.mxu0
    %v156 = vadd.f32 %v128, %v155
    %157 = vdwg.mxu0
    %v158 = vmax.f32 %v156, 0.0
    %v159 = vld [vmem:[#allocation5] sm:$0xff]
    %v160 = vld [vmem:[#allocation5 + $0x8] sm:$0xff]
    %v161 = vld [vmem:[#allocation5 + $0x10] sm:$0xff]
    %v162 = vld [vmem:[#allocation5 + $0x18] sm:$0xff]
    %v163 = vld [vmem:[#allocation5 + $0x20] sm:$0xff]
    %v164 = vld [vmem:[#allocation5 + $0x28] sm:$0xff]
    %v165 = vld [vmem:[#allocation5 + $0x30] sm:$0xff]
    %v166 = vld [vmem:[#allocation5 + $0x38] sm:$0xff]
    %v167 = vld [vmem:[#allocation5 + $0x40] sm:$0xff]
    %v168 = vld [vmem:[#allocation5 + $0x48] sm:$0xff]
    %v169 = vld [vmem:[#allocation5 + $0x50] sm:$0xff]
    %v170 = vld [vmem:[#allocation5 + $0x58] sm:$0xff]
    %v171 = vld [vmem:[#allocation5 + $0x60] sm:$0xff]
    %v172 = vld [vmem:[#allocation5 + $0x68] sm:$0xff]
    %v173 = vld [vmem:[#allocation5 + $0x70] sm:$0xff]
    %v174 = vld [vmem:[#allocation5 + $0x78] sm:$0xff]
    %v175 = vld [vmem:[#allocation5 + $0x80] sm:$0xff]
    %v176 = vld [vmem:[#allocation5 + $0x88] sm:$0xff]
    %v177 = vld [vmem:[#allocation5 + $0x90] sm:$0xff]
    %v178 = vld [vmem:[#allocation5 + $0x98] sm:$0xff]
    %v179 = vld [vmem:[#allocation5 + $0xa0] sm:$0xff]
    %v180 = vld [vmem:[#allocation5 + $0xa8] sm:$0xff]
    %v181 = vld [vmem:[#allocation5 + $0xb0] sm:$0xff]
    %v182 = vld [vmem:[#allocation5 + $0xb8] sm:$0xff]
    %v183 = vld [vmem:[#allocation5 + $0xc0] sm:$0xff]
    %v184 = vld [vmem:[#allocation5 + $0xc8] sm:$0xff]
    %v185 = vld [vmem:[#allocation5 + $0xd0] sm:$0xff]
    %v186 = vld [vmem:[#allocation5 + $0xd8] sm:$0xff]
    %v187 = vld [vmem:[#allocation5 + $0xe0] sm:$0xff]
    %v188 = vld [vmem:[#allocation5 + $0xe8] sm:$0xff]
    %v189 = vld [vmem:[#allocation5 + $0xf0] sm:$0xff]
    %v190 = vld [vmem:[#allocation5 + $0xf8] sm:$0xff]
    %v191 = vld [vmem:[#allocation5 + $0x100] sm:$0xff]
    %v192 = vld [vmem:[#allocation5 + $0x108] sm:$0xff]
    %v193 = vld [vmem:[#allocation5 + $0x110] sm:$0xff]
    %v194 = vld [vmem:[#allocation5 + $0x118] sm:$0xff]
    %v195 = vld [vmem:[#allocation5 + $0x120] sm:$0xff]
    %v196 = vld [vmem:[#allocation5 + $0x128] sm:$0xff]
    %v197 = vld [vmem:[#allocation5 + $0x130] sm:$0xff]
    %v198 = vld [vmem:[#allocation5 + $0x138] sm:$0xff]
    %v199 = vld [vmem:[#allocation5 + $0x140] sm:$0xff]
    %v200 = vld [vmem:[#allocation5 + $0x148] sm:$0xff]
    %v201 = vld [vmem:[#allocation5 + $0x150] sm:$0xff]
    %v202 = vld [vmem:[#allocation5 + $0x158] sm:$0xff]
    %v203 = vld [vmem:[#allocation5 + $0x160] sm:$0xff]
    %v204 = vld [vmem:[#allocation5 + $0x168] sm:$0xff]
    %v205 = vld [vmem:[#allocation5 + $0x170] sm:$0xff]
    %v206 = vld [vmem:[#allocation5 + $0x178] sm:$0xff]
    %v207 = vld [vmem:[#allocation5 + $0x180] sm:$0xff]
    %v208 = vld [vmem:[#allocation5 + $0x188] sm:$0xff]
    %v209 = vld [vmem:[#allocation5 + $0x190] sm:$0xff]
    %v210 = vld [vmem:[#allocation5 + $0x198] sm:$0xff]
    %v211 = vld [vmem:[#allocation5 + $0x1a0] sm:$0xff]
    %v212 = vld [vmem:[#allocation5 + $0x1a8] sm:$0xff]
    %v213 = vld [vmem:[#allocation5 + $0x1b0] sm:$0xff]
    %v214 = vld [vmem:[#allocation5 + $0x1b8] sm:$0xff]
    %v215 = vld [vmem:[#allocation5 + $0x1c0] sm:$0xff]
    %v216 = vld [vmem:[#allocation5 + $0x1c8] sm:$0xff]
    %v217 = vld [vmem:[#allocation5 + $0x1d0] sm:$0xff]
    %v218 = vld [vmem:[#allocation5 + $0x1d8] sm:$0xff]
    %v219 = vld [vmem:[#allocation5 + $0x1e0] sm:$0xff]
    %v220 = vld [vmem:[#allocation5 + $0x1e8] sm:$0xff]
    %v221 = vld [vmem:[#allocation5 + $0x1f0] sm:$0xff]
    %v222 = vld [vmem:[#allocation5 + $0x1f8] sm:$0xff]
    %223 = vmatpush.msra.mxu0 %v219
    %224 = vmatpush.msra.mxu0 %v215
    %225 = vmatpush.msra.mxu0 %v211
    %226 = vmatpush.msra.mxu0 %v207
    %227 = vmatpush.msra.mxu0 %v203
    %228 = vmatpush.msra.mxu0 %v199
    %229 = vmatpush.msra.mxu0 %v195
    %230 = vmatpush.msra.mxu0 %v191
    %231 = vmatpush.msra.mxu0 %v187
    %232 = vmatpush.msra.mxu0 %v183
    %233 = vmatpush.msra.mxu0 %v179
    %234 = vmatpush.msra.mxu0 %v175
    %235 = vmatpush.msra.mxu0 %v171
    %236 = vmatpush.msra.mxu0 %v167
    %237 = vmatpush.msra.mxu0 %v163
    %238 = vmatpush.msra.mxu0 %v159
    %239 = vmatmul.f32.gmra.mxu0 %v158
    %v240 = vpop.f32.mrf.mxu0
    %v241 = vadd.f32 0.0, %v240
    %242 = vdwg.mxu0
    %243 = vmatpush.msra.mxu0 %v220
    %244 = vmatpush.msra.mxu0 %v216
    %245 = vmatpush.msra.mxu0 %v212
    %246 = vmatpush.msra.mxu0 %v208
    %247 = vmatpush.msra.mxu0 %v204
    %248 = vmatpush.msra.mxu0 %v200
    %249 = vmatpush.msra.mxu0 %v196
    %250 = vmatpush.msra.mxu0 %v192
    %251 = vmatpush.msra.mxu0 %v188
    %252 = vmatpush.msra.mxu0 %v184
    %253 = vmatpush.msra.mxu0 %v180
    %254 = vmatpush.msra.mxu0 %v176
    %255 = vmatpush.msra.mxu0 %v172
    %256 = vmatpush.msra.mxu0 %v168
    %257 = vmatpush.msra.mxu0 %v164
    %258 = vmatpush.msra.mxu0 %v160
    %259 = vmatmul.f32.gmra.mxu0 %v158
    %v260 = vpop.f32.mrf.mxu0
    %v261 = vadd.f32 0.0, %v260
    %262 = vdwg.mxu0
    %263 = vmatpush.msra.mxu0 %v221
    %264 = vmatpush.msra.mxu0 %v217
    %265 = vmatpush.msra.mxu0 %v213
    %266 = vmatpush.msra.mxu0 %v209
    %267 = vmatpush.msra.mxu0 %v205
    %268 = vmatpush.msra.mxu0 %v201
    %269 = vmatpush.msra.mxu0 %v197
    %270 = vmatpush.msra.mxu0 %v193
    %271 = vmatpush.msra.mxu0 %v189
    %272 = vmatpush.msra.mxu0 %v185
    %273 = vmatpush.msra.mxu0 %v181
    %274 = vmatpush.msra.mxu0 %v177
    %275 = vmatpush.msra.mxu0 %v173
    %276 = vmatpush.msra.mxu0 %v169
    %277 = vmatpush.msra.mxu0 %v165
    %278 = vmatpush.msra.mxu0 %v161
    %279 = vmatmul.f32.gmra.mxu0 %v158
    %v280 = vpop.f32.mrf.mxu0
    %v281 = vadd.f32 0.0, %v280
    %282 = vdwg.mxu0
    %283 = vmatpush.msra.mxu0 %v222
    %284 = vmatpush.msra.mxu0 %v218
    %285 = vmatpush.msra.mxu0 %v214
    %286 = vmatpush.msra.mxu0 %v210
    %287 = vmatpush.msra.mxu0 %v206
    %288 = vmatpush.msra.mxu0 %v202
    %289 = vmatpush.msra.mxu0 %v198
    %290 = vmatpush.msra.mxu0 %v194
    %291 = vmatpush.msra.mxu0 %v190
    %292 = vmatpush.msra.mxu0 %v186
    %293 = vmatpush.msra.mxu0 %v182
    %294 = vmatpush.msra.mxu0 %v178
    %295 = vmatpush.msra.mxu0 %v174
    %296 = vmatpush.msra.mxu0 %v170
    %297 = vmatpush.msra.mxu0 %v166
    %298 = vmatpush.msra.mxu0 %v162
    %299 = vmatmul.f32.gmra.mxu0 %v158
    %v300 = vpop.f32.mrf.mxu0
    %v301 = vadd.f32 0.0, %v300
    %302 = vdwg.mxu0
    %v303 = vld [vmem:[%s5] sm:$0xff]
    %v304 = vld [vmem:[#allocation7] sm:$0xff]
    %v305 = vld [vmem:[#allocation7 + $0x8] sm:$0xff]
    %v306 = vld [vmem:[#allocation7 + $0x10] sm:$0xff]
    %v307 = vld [vmem:[#allocation7 + $0x18] sm:$0xff]
    %v308 = vld [vmem:[#allocation7 + $0x20] sm:$0xf]
    %v309 = vld [vmem:[%s6] sm:$0xff]
    %311 = vset.pattern.permute.xlu0 0
    %312 = vperm.xlu0 %311, %v309
    %v313 = vpop.permute.xlu0 %312
    %v316 = vsel %vm130, %v303, 0
    %v319 = vsel %vm134, %v308, 0
    %321 = vmatpush.msra.mxu0 0.0
    %322 = vmatpush.msra.mxu0 0.0
    %323 = vmatpush.msra.mxu0 0.0
    %324 = vmatpush.msra.mxu0 0.0
    %325 = vmatpush.msra.mxu0 0.0
    %326 = vmatpush.msra.mxu0 0.0
    %327 = vmatpush.msra.mxu0 0.0
    %328 = vmatpush.msra.mxu0 0.0
    %329 = vmatpush.msra.mxu0 0.0
    %330 = vmatpush.msra.mxu0 0.0
    %331 = vmatpush.msra.mxu0 0.0
    %332 = vmatpush.msra.mxu0 %v319
    %333 = vmatpush.msra.mxu0 %v307
    %334 = vmatpush.msra.mxu0 %v306
    %335 = vmatpush.msra.mxu0 %v305
    %336 = vmatpush.msra.mxu0 %v304
    %337 = vmatmul.f32.gmra.mxu0 %v316
    %v338 = vpop.f32.mrf.mxu0
    %v339 = vadd.f32 %v313, %v338
    %340 = vdwg.mxu0
    %v341 = vmax.f32 %v339, 0.0
    %v342 = vld [vmem:[#allocation8] sm:$0xff]
    %v343 = vld [vmem:[#allocation8 + $0x8] sm:$0xff]
    %v344 = vld [vmem:[#allocation8 + $0x10] sm:$0xff]
    %v345 = vld [vmem:[#allocation8 + $0x18] sm:$0xff]
    %v346 = vld [vmem:[#allocation8 + $0x20] sm:$0xff]
    %v347 = vld [vmem:[#allocation8 + $0x28] sm:$0xff]
    %v348 = vld [vmem:[#allocation8 + $0x30] sm:$0xff]
    %v349 = vld [vmem:[#allocation8 + $0x38] sm:$0xff]
    %v350 = vld [vmem:[#allocation8 + $0x40] sm:$0xff]
    %v351 = vld [vmem:[#allocation8 + $0x48] sm:$0xff]
    %v352 = vld [vmem:[#allocation8 + $0x50] sm:$0xff]
    %v353 = vld [vmem:[#allocation8 + $0x58] sm:$0xff]
    %v354 = vld [vmem:[#allocation8 + $0x60] sm:$0xff]
    %v355 = vld [vmem:[#allocation8 + $0x68] sm:$0xff]
    %v356 = vld [vmem:[#allocation8 + $0x70] sm:$0xff]
    %v357 = vld [vmem:[#allocation8 + $0x78] sm:$0xff]
    %v358 = vld [vmem:[#allocation8 + $0x80] sm:$0xff]
    %v359 = vld [vmem:[#allocation8 + $0x88] sm:$0xff]
    %v360 = vld [vmem:[#allocation8 + $0x90] sm:$0xff]
    %v361 = vld [vmem:[#allocation8 + $0x98] sm:$0xff]
    %v362 = vld [vmem:[#allocation8 + $0xa0] sm:$0xff]
    %v363 = vld [vmem:[#allocation8 + $0xa8] sm:$0xff]
    %v364 = vld [vmem:[#allocation8 + $0xb0] sm:$0xff]
    %v365 = vld [vmem:[#allocation8 + $0xb8] sm:$0xff]
    %v366 = vld [vmem:[#allocation8 + $0xc0] sm:$0xff]
    %v367 = vld [vmem:[#allocation8 + $0xc8] sm:$0xff]
    %v368 = vld [vmem:[#allocation8 + $0xd0] sm:$0xff]
    %v369 = vld [vmem:[#allocation8 + $0xd8] sm:$0xff]
    %v370 = vld [vmem:[#allocation8 + $0xe0] sm:$0xff]
    %v371 = vld [vmem:[#allocation8 + $0xe8] sm:$0xff]
    %v372 = vld [vmem:[#allocation8 + $0xf0] sm:$0xff]
    %v373 = vld [vmem:[#allocation8 + $0xf8] sm:$0xff]
    %v374 = vld [vmem:[#allocation8 + $0x100] sm:$0xff]
    %v375 = vld [vmem:[#allocation8 + $0x108] sm:$0xff]
    %v376 = vld [vmem:[#allocation8 + $0x110] sm:$0xff]
    %v377 = vld [vmem:[#allocation8 + $0x118] sm:$0xff]
    %v378 = vld [vmem:[#allocation8 + $0x120] sm:$0xff]
    %v379 = vld [vmem:[#allocation8 + $0x128] sm:$0xff]
    %v380 = vld [vmem:[#allocation8 + $0x130] sm:$0xff]
    %v381 = vld [vmem:[#allocation8 + $0x138] sm:$0xff]
    %v382 = vld [vmem:[#allocation8 + $0x140] sm:$0xff]
    %v383 = vld [vmem:[#allocation8 + $0x148] sm:$0xff]
    %v384 = vld [vmem:[#allocation8 + $0x150] sm:$0xff]
    %v385 = vld [vmem:[#allocation8 + $0x158] sm:$0xff]
    %v386 = vld [vmem:[#allocation8 + $0x160] sm:$0xff]
    %v387 = vld [vmem:[#allocation8 + $0x168] sm:$0xff]
    %v388 = vld [vmem:[#allocation8 + $0x170] sm:$0xff]
    %v389 = vld [vmem:[#allocation8 + $0x178] sm:$0xff]
    %v390 = vld [vmem:[#allocation8 + $0x180] sm:$0xff]
    %v391 = vld [vmem:[#allocation8 + $0x188] sm:$0xff]
    %v392 = vld [vmem:[#allocation8 + $0x190] sm:$0xff]
    %v393 = vld [vmem:[#allocation8 + $0x198] sm:$0xff]
    %v394 = vld [vmem:[#allocation8 + $0x1a0] sm:$0xff]
    %v395 = vld [vmem:[#allocation8 + $0x1a8] sm:$0xff]
    %v396 = vld [vmem:[#allocation8 + $0x1b0] sm:$0xff]
    %v397 = vld [vmem:[#allocation8 + $0x1b8] sm:$0xff]
    %v398 = vld [vmem:[#allocation8 + $0x1c0] sm:$0xff]
    %v399 = vld [vmem:[#allocation8 + $0x1c8] sm:$0xff]
    %v400 = vld [vmem:[#allocation8 + $0x1d0] sm:$0xff]
    %v401 = vld [vmem:[#allocation8 + $0x1d8] sm:$0xff]
    %v402 = vld [vmem:[#allocation8 + $0x1e0] sm:$0xff]
    %v403 = vld [vmem:[#allocation8 + $0x1e8] sm:$0xff]
    %v404 = vld [vmem:[#allocation8 + $0x1f0] sm:$0xff]
    %v405 = vld [vmem:[#allocation8 + $0x1f8] sm:$0xff]
    %406 = vmatpush.msra.mxu0 %v402
    %407 = vmatpush.msra.mxu0 %v398
    %408 = vmatpush.msra.mxu0 %v394
    %409 = vmatpush.msra.mxu0 %v390
    %410 = vmatpush.msra.mxu0 %v386
    %411 = vmatpush.msra.mxu0 %v382
    %412 = vmatpush.msra.mxu0 %v378
    %413 = vmatpush.msra.mxu0 %v374
    %414 = vmatpush.msra.mxu0 %v370
    %415 = vmatpush.msra.mxu0 %v366
    %416 = vmatpush.msra.mxu0 %v362
    %417 = vmatpush.msra.mxu0 %v358
    %418 = vmatpush.msra.mxu0 %v354
    %419 = vmatpush.msra.mxu0 %v350
    %420 = vmatpush.msra.mxu0 %v346
    %421 = vmatpush.msra.mxu0 %v342
    %422 = vmatmul.f32.gmra.mxu0 %v341
    %v423 = vpop.f32.mrf.mxu0
    %v424 = vadd.f32 0.0, %v423
    %425 = vdwg.mxu0
    %426 = vmatpush.msra.mxu0 %v403
    %427 = vmatpush.msra.mxu0 %v399
    %428 = vmatpush.msra.mxu0 %v395
    %429 = vmatpush.msra.mxu0 %v391
    %430 = vmatpush.msra.mxu0 %v387
    %431 = vmatpush.msra.mxu0 %v383
    %432 = vmatpush.msra.mxu0 %v379
    %433 = vmatpush.msra.mxu0 %v375
    %434 = vmatpush.msra.mxu0 %v371
    %435 = vmatpush.msra.mxu0 %v367
    %436 = vmatpush.msra.mxu0 %v363
    %437 = vmatpush.msra.mxu0 %v359
    %438 = vmatpush.msra.mxu0 %v355
    %439 = vmatpush.msra.mxu0 %v351
    %440 = vmatpush.msra.mxu0 %v347
    %441 = vmatpush.msra.mxu0 %v343
    %442 = vmatmul.f32.gmra.mxu0 %v341
    %v443 = vpop.f32.mrf.mxu0
    %v444 = vadd.f32 0.0, %v443
    %445 = vdwg.mxu0
    %446 = vmatpush.msra.mxu0 %v404
    %447 = vmatpush.msra.mxu0 %v400
    %448 = vmatpush.msra.mxu0 %v396
    %449 = vmatpush.msra.mxu0 %v392
    %450 = vmatpush.msra.mxu0 %v388
    %451 = vmatpush.msra.mxu0 %v384
    %452 = vmatpush.msra.mxu0 %v380
    %453 = vmatpush.msra.mxu0 %v376
    %454 = vmatpush.msra.mxu0 %v372
    %455 = vmatpush.msra.mxu0 %v368
    %456 = vmatpush.msra.mxu0 %v364
    %457 = vmatpush.msra.mxu0 %v360
    %458 = vmatpush.msra.mxu0 %v356
    %459 = vmatpush.msra.mxu0 %v352
    %460 = vmatpush.msra.mxu0 %v348
    %461 = vmatpush.msra.mxu0 %v344
    %462 = vmatmul.f32.gmra.mxu0 %v341
    %v463 = vpop.f32.mrf.mxu0
    %v464 = vadd.f32 0.0, %v463
    %465 = vdwg.mxu0
    %466 = vmatpush.msra.mxu0 %v405
    %467 = vmatpush.msra.mxu0 %v401
    %468 = vmatpush.msra.mxu0 %v397
    %469 = vmatpush.msra.mxu0 %v393
    %470 = vmatpush.msra.mxu0 %v389
    %471 = vmatpush.msra.mxu0 %v385
    %472 = vmatpush.msra.mxu0 %v381
    %473 = vmatpush.msra.mxu0 %v377
    %474 = vmatpush.msra.mxu0 %v373
    %475 = vmatpush.msra.mxu0 %v369
    %476 = vmatpush.msra.mxu0 %v365
    %477 = vmatpush.msra.mxu0 %v361
    %478 = vmatpush.msra.mxu0 %v357
    %479 = vmatpush.msra.mxu0 %v353
    %480 = vmatpush.msra.mxu0 %v349
    %481 = vmatpush.msra.mxu0 %v345
    %482 = vmatmul.f32.gmra.mxu0 %v341
    %v483 = vpop.f32.mrf.mxu0
    %v484 = vadd.f32 0.0, %v483
    %485 = vdwg.mxu0
    %486 = vst [vmem:[#allocation12] sm:$0xff] %v424
    %487 = vst [vmem:[#allocation12 + $0x8] sm:$0xff] %v444
    %488 = vst [vmem:[#allocation12 + $0x10] sm:$0xff] %v464
    %489 = vst [vmem:[#allocation12 + $0x18] sm:$0xff] %v484
    %v490 = vld [vmem:[%s9] sm:$0xff]
    %v491 = vld [vmem:[%s10] sm:$0xff]
    %v492 = vld [vmem:[#allocation10] sm:$0xff]
    %v493 = vld [vmem:[#allocation10 + $0x8] sm:$0xff]
    %v494 = vld [vmem:[#allocation10 + $0x10] sm:$0xff]
    %v495 = vld [vmem:[#allocation10 + $0x18] sm:$0xff]
    %v496 = vmul.f32 %v492, 0.9
    %v497 = vmul.f32 %v493, 0.9
    %v498 = vmul.f32 %v494, 0.9
    %v499 = vmul.f32 %v495, 0.9
    %v500 = vadd.f32 %v496, %v241
    %v501 = vadd.f32 %v497, %v261
    %v502 = vadd.f32 %v498, %v281
    %v503 = vadd.f32 %v499, %v301
    %v504 = vadd.f32 %v500, %v501
    %v505 = vadd.f32 %v504, %v502
    %v506 = vadd.f32 %v505, %v503
    %507 = vadd.xlane.f32.xlu0 %v506
    %v508 = vpop.xlane.xlu0 %507
    %v509 = vmul.f32 %v508, 0.001953125
    %v510 = vsub.f32 %v500, %v509
    %v511 = vsub.f32 %v501, %v509
    %v512 = vsub.f32 %v502, %v509
    %v513 = vsub.f32 %v503, %v509
    %v514 = vmul.f32 %v510, %v510
    %v515 = vmul.f32 %v511, %v511
    %v516 = vmul.f32 %v512, %v512
    %v517 = vmul.f32 %v513, %v513
    %v518 = vadd.f32 %v514, %v515
    %v519 = vadd.f32 %v518, %v516
    %v520 = vadd.f32 %v519, %v517
    %521 = vadd.xlane.f32.xlu0 %v520
    %v522 = vpop.xlane.xlu0 %521
    %v523 = vmul.f32 %v522, 0.001953125
    %v524 = vadd.f32 %v523, 1e-05
    %v525 = vrsqrt.pop %v524
    %v526 = vmul.f32 %v525, %v524
    %v527 = vmul.f32 %v526, %v525
    %v528 = vmul.f32 0.5, %v527
    %v529 = vsub.f32 1.5, %v528
    %v530 = vmul.f32 %v525, %v529
    %vm531 = vweird.f32 %v524
    %vm532 = vweird.f32 %v525
    %vm533 = vmor %vm531, %vm532
    %v534 = vsel %vm533, %v525, %v530
    %v535 = vmul.f32 %v510, %v534
    %v536 = vmul.f32 %v511, %v534
    %v537 = vmul.f32 %v512, %v534
    %v538 = vmul.f32 %v513, %v534
    %540 = vset.pattern.permute.xlu0 0
    %541 = vperm.xlu0 %540, %v490
    %v542 = vpop.permute.xlu0 %541
    %v544 = vmul.f32 %v542, %v535
    %v545 = vmul.f32 %v542, %v536
    %v546 = vmul.f32 %v542, %v537
    %v547 = vmul.f32 %v542, %v538
    %549 = vset.pattern.permute.xlu0 0
    %550 = vperm.xlu0 %549, %v491
    %v551 = vpop.permute.xlu0 %550
    %v553 = vadd.f32 %v544, %v551
    %v554 = vadd.f32 %v545, %v551
    %v555 = vadd.f32 %v546, %v551
    %v556 = vadd.f32 %v547, %v551
    %v557 = vsub.f32 %v553, %v496
    %v558 = vsub.f32 %v554, %v497
    %v559 = vsub.f32 %v555, %v498
    %v560 = vsub.f32 %v556, %v499
    %v561 = vmul.f32 %v496, 0.75
    %v562 = vmul.f32 %v497, 0.75
    %v563 = vmul.f32 %v498, 0.75
    %v564 = vmul.f32 %v499, 0.75
    %v565 = vmul.f32 %v557, 0.5
    %v566 = vmul.f32 %v558, 0.5
    %v567 = vmul.f32 %v559, 0.5
    %v568 = vmul.f32 %v560, 0.5
    %v569 = vadd.f32 %v496, %v565
    %v570 = vadd.f32 %v497, %v566
    %v571 = vadd.f32 %v498, %v567
    %v572 = vadd.f32 %v499, %v568
    %v573 = vadd.f32 %v569, %v424
    %v574 = vadd.f32 %v570, %v444
    %v575 = vadd.f32 %v571, %v464
    %v576 = vadd.f32 %v572, %v484
    %v577 = vadd.f32 %v573, %v574
    %v578 = vadd.f32 %v577, %v575
    %v579 = vadd.f32 %v578, %v576
    %580 = vadd.xlane.f32.xlu0 %v579
    %v581 = vpop.xlane.xlu0 %580
    %v582 = vmul.f32 %v581, 0.001953125
    %v583 = vsub.f32 %v573, %v582
    %v584 = vsub.f32 %v574, %v582
    %v585 = vsub.f32 %v575, %v582
    %v586 = vsub.f32 %v576, %v582
    %v587 = vmul.f32 %v583, %v583
    %v588 = vmul.f32 %v584, %v584
    %v589 = vmul.f32 %v585, %v585
    %v590 = vmul.f32 %v586, %v586
    %v591 = vadd.f32 %v587, %v588
    %v592 = vadd.f32 %v591, %v589
    %v593 = vadd.f32 %v592, %v590
    %594 = vadd.xlane.f32.xlu0 %v593
    %v595 = vpop.xlane.xlu0 %594
    %v596 = vmul.f32 %v595, 0.001953125
    %v597 = vadd.f32 %v596, 1e-05
    %v598 = vrsqrt.pop %v597
    %v599 = vmul.f32 %v598, %v597
    %v600 = vmul.f32 %v599, %v598
    %v601 = vmul.f32 0.5, %v600
    %v602 = vsub.f32 1.5, %v601
    %v603 = vmul.f32 %v598, %v602
    %vm604 = vweird.f32 %v597
    %vm605 = vweird.f32 %v598
    %vm606 = vmor %vm604, %vm605
    %v607 = vsel %vm606, %v598, %v603
    %v608 = vmul.f32 %v583, %v607
    %v609 = vmul.f32 %v584, %v607
    %v610 = vmul.f32 %v585, %v607
    %v611 = vmul.f32 %v586, %v607
    %v612 = vmul.f32 %v542, %v608
    %v613 = vmul.f32 %v542, %v609
    %v614 = vmul.f32 %v542, %v610
    %v615 = vmul.f32 %v542, %v611
    %v616 = vadd.f32 %v612, %v551
    %v617 = vadd.f32 %v613, %v551
    %v618 = vadd.f32 %v614, %v551
    %v619 = vadd.f32 %v615, %v551
    %v620 = vadd.f32 %v565, %v616
    %v621 = vadd.f32 %v566, %v617
    %v622 = vadd.f32 %v567, %v618
    %v623 = vadd.f32 %v568, %v619
    %v624 = vmul.f32 %v620, 0.25
    %v625 = vmul.f32 %v621, 0.25
    %v626 = vmul.f32 %v622, 0.25
    %v627 = vmul.f32 %v623, 0.25
    %v628 = vadd.f32 %v561, %v624
    %v629 = vadd.f32 %v562, %v625
    %v630 = vadd.f32 %v563, %v626
    %v631 = vadd.f32 %v564, %v627
    %632 = vst [vmem:[#allocation11] sm:$0xff] %v628
    %633 = vst [vmem:[#allocation11 + $0x8] sm:$0xff] %v629
    %634 = vst [vmem:[#allocation11 + $0x10] sm:$0xff] %v630
    %635 = vst [vmem:[#allocation11 + $0x18] sm:$0xff] %v631
    // Predicated region
    $region66: #{tpu_custom_call.1} parent=1 // pred_check
      _
    $region67: #{tpu_custom_call.1} parent=1 // pred_check_branch
      %637 = sbr.rel (0) target = $region69
    $region68: #{tpu_custom_call.1} parent=1 // pred_region
      %639 = vsyncadd [#allocation4], 0
      %s641 = sshll.u32 [#allocation11], 4
      %s642 = int_to_ptr.vmem [resolvable:$true] %s641
      %s643 = sshll.u32 %s11, 4
      %s644 = int_to_ptr.hbm [resolvable:$true] %s643
      %646 = dma.vmem_to_hbm [thread:$0]  %s642, 512, %s644, [#allocation4]
    $region69: #{tpu_custom_call.1} parent=1 // pred_fallthru
      _
    // Predicated region
    $region70: #{tpu_custom_call.1} parent=1 // pred_check
      _
    $region71: #{tpu_custom_call.1} parent=1 // pred_check_branch
      %648 = sbr.rel (0) target = $region73
    $region72: #{tpu_custom_call.1} parent=1 // pred_region
      %650 = vsyncadd [#allocation13], 0
      %s652 = sshll.u32 [#allocation12], 4
      %s653 = int_to_ptr.vmem [resolvable:$true] %s652
      %s654 = sshll.u32 %s12, 4
      %s655 = int_to_ptr.hbm [resolvable:$true] %s654
      %657 = dma.vmem_to_hbm [thread:$0]  %s653, 512, %s655, [#allocation13]
    $region73: #{tpu_custom_call.1} parent=1 // pred_fallthru
      _
    // Predicated region
    $region74: #{tpu_custom_call.1} parent=1 // pred_check
      _
    $region75: #{tpu_custom_call.1} parent=1 // pred_check_branch
      %659 = sbr.rel (0) target = $region77
    $region76: #{tpu_custom_call.1} parent=1 // pred_region
      %661 = dma.done [#allocation4], 512
    $region77: #{tpu_custom_call.1} parent=1 // pred_fallthru
      _
    // Predicated region
    $region78: #{tpu_custom_call.1} parent=1 // pred_check
      _
    $region79: #{tpu_custom_call.1} parent=1 // pred_check_branch
      %663 = sbr.rel (0) target = $region81
    $region80: #{tpu_custom_call.1} parent=1 // pred_region
      %665 = dma.done [#allocation13], 512
    $region81: #{tpu_custom_call.1} parent=1 // pred_fallthru
      _
    %666 = vsyncpa [#allocation3], 1
    %667 = vsyncpa [#allocation6], 1
    %668 = vsyncpa [#allocation9], 1
    %669 = vsyncpa [#allocation4], 1
    %670 = vsyncpa [#allocation13], 1

</llo_original>
